<compile_context>
chip_gen: v5e
topology: v5e:2x2
jax: 0.10.0
libtpu: 0.0.40
codegen_flags: <defaults>
</compile_context>

<pallas_src>
import jax
import jax.numpy as jnp
from jax.experimental import pallas as pl
from jax.experimental.pallas import tpu as pltpu

_IN_FEATURES = 50


def _as_f32(a):
    return a if a.dtype == jnp.float32 else a.astype(jnp.float32)


# ---------------------------------------------------------------------------
# Single-row kernel: exactly the module's forward semantics, (1, 50) -> (1, 1).
# ---------------------------------------------------------------------------
def _fc_single_kernel(x_ref, w_ref, b_ref, o_ref):
    # x_ref: (1, 50) VMEM   w_ref: (1, 50) VMEM   b_ref: (1, 1) SMEM
    # o_ref: (1, 1) SMEM  (scalar write, no padded VMEM output tile)
    acc = jnp.sum(x_ref[...] * w_ref[...], axis=-1, keepdims=True)   # (1, 1)
    o_ref[0, 0] = acc[0, 0] + b_ref[0, 0]


def fclayer_forward(x, weight, bias):
    """x: any array with 50 elements total; weight: (1, 50); bias: (1,)."""
    x_flat = x.reshape(1, -1)                              # == x.view(1, -1)
    assert x_flat.shape == (1, _IN_FEATURES), (
        f"fclayer expects {_IN_FEATURES} features, got {x_flat.shape}")

    x_flat = _as_f32(x_flat)
    w = _as_f32(weight)
    b2d = _as_f32(bias.reshape(1, 1))

    out = pl.pallas_call(
        _fc_single_kernel,
        out_shape=jax.ShapeDtypeStruct((1, 1), jnp.float32),
        in_specs=[
            pl.BlockSpec(memory_space=pltpu.MemorySpace.VMEM),   # x (1, 50)
            pl.BlockSpec(memory_space=pltpu.MemorySpace.VMEM),   # W (1, 50)
            pl.BlockSpec(memory_space=pltpu.MemorySpace.SMEM),   # b (1, 1)
        ],
        out_specs=pl.BlockSpec(memory_space=pltpu.MemorySpace.SMEM),
        cost_estimate=pl.CostEstimate(flops=2 * _IN_FEATURES,
                                      transcendentals=0,
                                      bytes_accessed=2 * _IN_FEATURES * 4 + 8),
    )(x_flat, w, b2d)

    return out.reshape(-1, 1)                              # == .view(-1, 1)


# ---------------------------------------------------------------------------
# Batched variant (perf-review recommendation): (B, 50) -> (B, 1).
#   * x passed transposed (50, B_pad): reduction over sublanes, output is a
#     lane-dense (1, tile) slab -> unmasked vector stores.
#   * grid over lane tiles of B, "parallel" for v7x's second TensorCore.
#   * weight resident in VMEM (index_map always returns block (0, 0)).
# ---------------------------------------------------------------------------
def _fc_batched_kernel(xt_ref, wt_ref, b_ref, o_ref):
    # xt_ref: (50, T) VMEM   wt_ref: (50, 1) VMEM   b_ref: (1, 1) SMEM
    # o_ref: (1, T) VMEM (lane-dense)
    acc = jnp.sum(xt_ref[...] * wt_ref[...], axis=0, keepdims=True)  # (1, T)
    o_ref[...] = acc + b_ref[0, 0]


def fclayer_forward_batched(x, weight, bias, *, lane_tile=512):
    """x: (B, 50) -> (B, 1). Amortizes launch/DMA overhead over B rows."""
    B = x.shape[0]
    x2 = _as_f32(x.reshape(B, _IN_FEATURES))
    wt = _as_f32(weight).reshape(_IN_FEATURES, 1)
    b2d = _as_f32(bias.reshape(1, 1))

    if B <= lane_tile:
        tile, b_pad = B, B            # single tile: block == full array, any B
    else:
        tile = lane_tile              # multi-tile: lane tile multiple of 128
        assert tile % 128 == 0
        b_pad = pl.cdiv(B, tile) * tile

    xt = x2.T                                             # (50, B) layout plumbing
    if b_pad != B:
        xt = jnp.pad(xt, ((0, 0), (0, b_pad - B)))

    out = pl.pallas_call(
        _fc_batched_kernel,
        out_shape=jax.ShapeDtypeStruct((1, b_pad), jnp.float32),
        grid=(b_pad // tile,),
        in_specs=[
            pl.BlockSpec((_IN_FEATURES, tile), lambda i: (0, i)),   # x.T tile
            pl.BlockSpec((_IN_FEATURES, 1), lambda i: (0, 0)),      # resident W
            pl.BlockSpec((1, 1), lambda i: (0, 0),
                         memory_space=pltpu.MemorySpace.SMEM),      # bias
        ],
        out_specs=pl.BlockSpec((1, tile), lambda i: (0, i)),
        compiler_params=pltpu.CompilerParams(
            dimension_semantics=("parallel",)),
        cost_estimate=pl.CostEstimate(
            flops=2 * _IN_FEATURES * b_pad, transcendentals=0,
            bytes_accessed=(_IN_FEATURES * b_pad + _IN_FEATURES + 1 + b_pad) * 4),
    )(xt, wt, b2d)

    return out[0, :B].reshape(B, 1)


if __name__ == "__main__":
    key = jax.random.PRNGKey(0)
    kx, kw, kb, kxb = jax.random.split(key, 4)

    # Deterministic parameter init mimicking nn.Linear(50, 1):
    # uniform(-1/sqrt(50), 1/sqrt(50)) for both weight and bias.
    bound = 1.0 / jnp.sqrt(50.0)
    weight = jax.random.uniform(kw, (1, 50), minval=-bound, maxval=bound,
                                dtype=jnp.float32)
    bias = jax.random.uniform(kb, (1,), minval=-bound, maxval=bound,
                              dtype=jnp.float32)

    # --- single-row path: exact module semantics --------------------------
    x = jax.random.normal(kx, (2, 25), dtype=jnp.float32)   # 50 elements total
    y = jax.block_until_ready(fclayer_forward(x, weight, bias))
    y_ref = (x.reshape(1, -1) @ weight.T + bias).reshape(-1, 1)
    assert y.shape == (1, 1), y.shape
    assert jnp.allclose(y, y_ref, atol=1e-4, rtol=1e-4), (y, y_ref)

    # --- batched path: amortizes per-call overhead over B rows ------------
    xb = jax.random.normal(kxb, (256, 50), dtype=jnp.float32)
    yb = jax.block_until_ready(
        fclayer_forward_batched(xb, weight, bias, lane_tile=128))
    yb_ref = xb @ weight.T + bias                            # (256, 1)
    assert yb.shape == (256, 1), yb.shape
    assert jnp.allclose(yb, yb_ref, atol=1e-4, rtol=1e-4)

    print("KERNEL_OK")
</pallas_src>

<mosaic_0001>
module attributes {stable_mosaic.version = 11 : i64} {
  func.func @_fc_single_kernel(%arg0: memref<1x50xf32, #tpu.memory_space<vmem>>, %arg1: memref<1x50xf32, #tpu.memory_space<vmem>>, %arg2: memref<1x1xf32, #tpu.memory_space<smem>>, %arg3: memref<1x1xf32, #tpu.memory_space<smem>>) attributes {dimension_semantics = [], scalar_prefetch = 0 : i64, scratch_operands = 0 : i64, tpu.core_type = #tpu.core_type<tc>} {
    %c0 = arith.constant 0 : index
    %c0_0 = arith.constant 0 : index
    %0 = vector.load %arg0[%c0, %c0_0] : memref<1x50xf32, #tpu.memory_space<vmem>>, vector<1x50xf32>
    %c0_1 = arith.constant 0 : index
    %c0_2 = arith.constant 0 : index
    %1 = vector.load %arg1[%c0_1, %c0_2] : memref<1x50xf32, #tpu.memory_space<vmem>>, vector<1x50xf32>
    %2 = arith.mulf %0, %1 : vector<1x50xf32>
    %cst = arith.constant dense<0.000000e+00> : vector<1xf32>
    %3 = vector.multi_reduction <add>, %2, %cst [1] : vector<1x50xf32> to vector<1xf32>
    %4 = vector.shape_cast %3 : vector<1xf32> to vector<1x1xf32>
    %5 = vector.extract %4[0, 0] : f32 from vector<1x1xf32>
    %c0_3 = arith.constant 0 : index
    %c0_4 = arith.constant 0 : index
    %6 = memref.load %arg2[%c0_3, %c0_4] : memref<1x1xf32, #tpu.memory_space<smem>>
    %7 = arith.addf %5, %6 : f32
    %c0_5 = arith.constant 0 : index
    %c0_6 = arith.constant 0 : index
    %8 = memref.load %arg3[%c0_5, %c0_6] : memref<1x1xf32, #tpu.memory_space<smem>>
    memref.store %7, %arg3[%c0_5, %c0_6] : memref<1x1xf32, #tpu.memory_space<smem>>
    return
  }
}

</mosaic_0001>

<llo_original>
// kernel: tpu_custom_call.1
$region0: #{tpu_custom_call.1}
  #allocation0 [shape = 'u32[]', space=smem, size = 0x4, offset = 0x4, fixed_abs, tag = 'smem constant byte address 0x4 - core index']
  #allocation1 [shape = 'u32[72,128]{1,0:T(1,128)}', space=vmem, size = 0x9000, scoped, tag = 'internal scratch']
  #allocation2 [shape = 'f32[1,1]{1,0:T(1,128)S(6)}', space=smem, size = 0x200, scoped, tag = 'scoped memory for tpu_custom_call.1']
  %s0 = inlined_call_operand.vmem [shape: f32[1,50], index: 0, kind: input, shape index: {}]
  %s1 = inlined_call_operand.vmem [shape: f32[1,50], index: 1, kind: input, shape index: {}]
  %s2 = inlined_call_operand.<no memory space> [shape: f32[1,1], index: 2, kind: input, shape index: {}]
  %s3 = inlined_call_operand.hbm [shape: f32[1,1], index: 3, kind: output, shape index: {}]
  %s4 = sld [smem:[#allocation0]]
  $region22: #{tpu_custom_call.1} parent=0
    _
  %s6 = ssub.s32 1, %s4
  %s7 = scalar_select 0, %s6, %s4
  %8 = sst [smem:[#allocation2]] %s2
  $region1: #{tpu_custom_call.1} parent=0
    #allocation3 [shape = 'u8[512]{0}', space=smem, size = 0x200, scoped, tag = 'output window, operand 0, single buffered']
    #allocation4 [shape = 's32[1]{0}', space=sflag, size = 0x4, scoped, tag = 'scoped memory for tpu_custom_call.1']
    %9 = vsyncpa [#allocation4], 0
    // Predicated region
    $region2: #{tpu_custom_call.1} parent=1 // pred_check
      _
    $region3: #{tpu_custom_call.1} parent=1 // pred_check_branch
      %11 = sbr.rel (0) target = $region5
    $region4: #{tpu_custom_call.1} parent=1 // pred_region
      _
    $region5: #{tpu_custom_call.1} parent=1 // pred_fallthru
      _
    // Predicated region
    $region6: #{tpu_custom_call.1} parent=1 // pred_check
      _
    $region7: #{tpu_custom_call.1} parent=1 // pred_check_branch
      %13 = sbr.rel (0) target = $region9
    $region8: #{tpu_custom_call.1} parent=1 // pred_region
      _
    $region9: #{tpu_custom_call.1} parent=1 // pred_fallthru
      _
    // Predicated region
    $region10: #{tpu_custom_call.1} parent=1 // pred_check
      _
    $region11: #{tpu_custom_call.1} parent=1 // pred_check_branch
      %15 = sbr.rel (0) target = $region13
    $region12: #{tpu_custom_call.1} parent=1 // pred_region
      _
    $region13: #{tpu_custom_call.1} parent=1 // pred_fallthru
      _
    %v16 = vld [vmem:[%s0] sm:$0x1]
    %v17 = vld [vmem:[%s1] sm:$0x1]
    %v18 = vmul.f32 %v16, %v17
    %vm19 = vcmask 401408
    %v20 = vsel %vm19, %v18, 0.0
    %21 = vadd.xlane.f32.xlu0 %v20
    %v22 = vpop.xlane.xlu0 %21
    %s23 = vtos %v22
    %s24 = sld [smem:[#allocation2]]
    %s25 = sadd.f32 %s23, %s24
    %s26 = scalar_lea.smem [#allocation3], 0
    %27 = sst [smem:[%s26]] %s25
    // Predicated region
    $region14: #{tpu_custom_call.1} parent=1 // pred_check
      _
    $region15: #{tpu_custom_call.1} parent=1 // pred_check_branch
      %29 = sbr.rel (0) target = $region17
    $region16: #{tpu_custom_call.1} parent=1 // pred_region
      %31 = vsyncadd [#allocation4], 0
      %s33 = sshll.u32 %s3, 4
      %s34 = int_to_ptr.hbm [resolvable:$true] %s33
      %36 = dma.smem_to_hbm [#allocation3], 16, %s34, [#allocation4]
    $region17: #{tpu_custom_call.1} parent=1 // pred_fallthru
      _
    // Predicated region
    $region18: #{tpu_custom_call.1} parent=1 // pred_check
      _
    $region19: #{tpu_custom_call.1} parent=1 // pred_check_branch
      %38 = sbr.rel (0) target = $region21
    $region20: #{tpu_custom_call.1} parent=1 // pred_region
      %40 = dma.done [#allocation4], 16
    $region21: #{tpu_custom_call.1} parent=1 // pred_fallthru
      _
    %41 = sfence
    %42 = vsyncpa [#allocation4], 1

</llo_original>
